<compile_context>
chip_gen: v6e
topology: v6e:2x2x1
jax: 0.10.0
libtpu: 0.0.40
codegen_flags: <defaults>
</compile_context>

<pallas_src>
import functools

import jax
import jax.numpy as jnp
from jax import lax
from jax.experimental import pallas as pl
from jax.experimental.pallas import tpu as pltpu

_LANES = 128


def _round_up(x, m):
    return ((x + m - 1) // m) * m


def _cdiv(a, b):
    return -(-a // b)


def decoder_kernel(z_ref, w1_ref, b1_ref, w2r_ref, b2_ref, o_ref):
    # z_ref  : (TB, F)  streamed input tile (unpadded feature dim)
    # w1_ref : (F, H)   hidden weight (VMEM-resident, constant index_map)
    # b1_ref : (1, H)   hidden bias row
    # w2r_ref: (1, H)   output weight stored as a row
    # b2_ref : (1, 1)   output bias scalar in SMEM
    # o_ref  : (1, TB)  lane-dense output row for this batch tile
    h = jnp.dot(z_ref[...], w1_ref[...], preferred_element_type=jnp.float32)
    h = jnp.maximum(h + b1_ref[...].astype(jnp.float32), 0.0)
    # (1, H) x (TB, H)^T -> (1, TB): A @ B^T MXU pattern, lane-dense result,
    # no N=1 matmul and no masked partial stores.
    out = lax.dot_general(
        w2r_ref[...].astype(jnp.float32),
        h,
        dimension_numbers=(((1,), (1,)), ((), ())),
        preferred_element_type=jnp.float32,
    )
    o_ref[...] = (out + b2_ref[0, 0]).astype(o_ref.dtype)


def _choose_tiling(batch, max_tile_b):
    """Static batch tiling: single full tile if it fits, else 128-aligned
    tiles with an even step count (v7x shares the grid across 2 TCs)."""
    max_tile_b = max(_LANES, (int(max_tile_b) // _LANES) * _LANES)
    if batch <= max_tile_b:
        return batch, 1
    tile_b = max_tile_b
    num_tiles = _cdiv(batch, tile_b)
    if num_tiles % 2 == 1:
        tile_b = min(max_tile_b, _round_up(_cdiv(batch, num_tiles + 1), _LANES))
        num_tiles = _cdiv(batch, tile_b)
    return tile_b, num_tiles


@functools.partial(jax.jit, static_argnames=("tile_b", "num_tiles"))
def _decoder_pallas(z, w1, b1, w2, b2, *, tile_b, num_tiles):
    B, F = z.shape
    Fw, H = w1.shape
    assert Fw == F, "w1 must be (feature_size, hidden_size)"
    dtype = z.dtype

    # Tiny parameter reshapes fuse into the jitted prologue (no per-call pads).
    b1_row = jnp.reshape(b1, (1, H)).astype(dtype)
    w2_row = jnp.reshape(w2, (1, H)).astype(dtype)  # (H,1) -> (1,H), same order
    b2_s = jnp.reshape(b2, (1, 1)).astype(dtype)

    itemsize = jnp.dtype(dtype).itemsize
    flops = 2 * B * (F * H + H)
    bytes_accessed = (z.size + w1.size + H + H + 1 + B) * itemsize

    out_rows = pl.pallas_call(
        decoder_kernel,
        out_shape=jax.ShapeDtypeStruct((num_tiles, tile_b), dtype),
        grid_spec=pltpu.PrefetchScalarGridSpec(
            num_scalar_prefetch=0,
            grid=(num_tiles,),
            in_specs=[
                pl.BlockSpec((tile_b, F), lambda i: (i, 0)),        # streamed z
                pl.BlockSpec((F, H), lambda i: (0, 0)),             # W1 resident
                pl.BlockSpec((1, H), lambda i: (0, 0)),             # b1 resident
                pl.BlockSpec((1, H), lambda i: (0, 0)),             # W2 row resident
                pl.BlockSpec(memory_space=pltpu.MemorySpace.SMEM),  # b2 scalar
            ],
            out_specs=pl.BlockSpec((1, tile_b), lambda i: (i, 0)),  # lane-dense
        ),
        compiler_params=pltpu.CompilerParams(
            dimension_semantics=("parallel",),
        ),
        cost_estimate=pl.CostEstimate(
            flops=flops, transcendentals=0, bytes_accessed=bytes_accessed
        ),
    )(z, w1, b1_row, w2_row, b2_s)

    # (num_tiles, tile_b) row-major matches batch-tile order; strip the ragged
    # tail (garbage rows from the last partial input tile) and restore (B, 1).
    return out_rows.reshape(num_tiles * tile_b)[:B].reshape(B, 1)


def decoder_forward(z, w1, b1, w2, b2, *, max_tile_b=4096):
    """z:(B,F), w1:(F,H), b1:(H,), w2:(H,1), b2: 1-element -> (B,1)."""
    assert b2.size == 1, "output bias must have exactly one element"
    tile_b, num_tiles = _choose_tiling(z.shape[0], max_tile_b)
    return _decoder_pallas(z, w1, b1, w2, b2, tile_b=tile_b, num_tiles=num_tiles)


def decoder_reference(z, w1, b1, w2, b2):
    h = jnp.maximum(z @ w1 + jnp.reshape(b1, (1, -1)), 0.0)
    return h @ jnp.reshape(w2, (-1, 1)) + jnp.reshape(b2, (1, 1))


if __name__ == "__main__":
    # Small shapes consistent with the module's forward.
    batch = 256
    feature_size = 32
    hidden_size = 64

    key = jax.random.PRNGKey(0)
    k_z, k_w1, k_b1, k_w2, k_b2 = jax.random.split(key, 5)

    z = jax.random.normal(k_z, (batch, feature_size), dtype=jnp.float32)

    # Deterministic parameter init mirroring PyTorch Linear shapes
    # (weights stored transposed as (in, out)).
    bound1 = 1.0 / (feature_size ** 0.5)
    w1 = jax.random.uniform(k_w1, (feature_size, hidden_size),
                            minval=-bound1, maxval=bound1, dtype=jnp.float32)
    b1 = jax.random.uniform(k_b1, (hidden_size,),
                            minval=-bound1, maxval=bound1, dtype=jnp.float32)

    bound2 = 1.0 / (hidden_size ** 0.5)
    w2 = jax.random.uniform(k_w2, (hidden_size, 1),
                            minval=-bound2, maxval=bound2, dtype=jnp.float32)
    b2 = jax.random.uniform(k_b2, (1, 1),
                            minval=-bound2, maxval=bound2, dtype=jnp.float32)

    out = decoder_forward(z, w1, b1, w2, b2)
    out = jax.block_until_ready(out)

    ref = decoder_reference(z, w1, b1, w2, b2)
    assert out.shape == (batch, 1)
    assert jnp.allclose(out, ref, atol=1e-5, rtol=1e-5), "mismatch vs reference"

    # Also exercise the multi-tile grid path with a ragged last tile.
    B2 = 4096 + 300
    z2 = jax.random.normal(jax.random.PRNGKey(1), (B2, feature_size), jnp.float32)
    out2 = jax.block_until_ready(
        decoder_forward(z2, w1, b1, w2, b2, max_tile_b=2048))
    ref2 = decoder_reference(z2, w1, b1, w2, b2)
    assert out2.shape == (B2, 1)
    assert jnp.allclose(out2, ref2, atol=1e-5, rtol=1e-5), "multi-tile mismatch"

    print("KERNEL_OK")
</pallas_src>

<mosaic_0001>
module attributes {stable_mosaic.version = 11 : i64} {
  func.func @decoder_kernel(%arg0: i32, %arg1: memref<256x32xf32, #tpu.memory_space<vmem>>, %arg2: memref<32x64xf32, #tpu.memory_space<vmem>>, %arg3: memref<1x64xf32, #tpu.memory_space<vmem>>, %arg4: memref<1x64xf32, #tpu.memory_space<vmem>>, %arg5: memref<1x1xf32, #tpu.memory_space<smem>>, %arg6: memref<1x256xf32, #tpu.memory_space<vmem>>) attributes {dimension_semantics = [#tpu.dimension_semantics<parallel>], iteration_bounds = array<i64: 1>, scalar_prefetch = 0 : i64, scratch_operands = 0 : i64, tpu.core_type = #tpu.core_type<tc>, window_params = [{transform_indices = @transform_0, window_bounds = array<i64: 256, 32>}, {pipeline_mode = #tpu.pipeline_mode<synchronous>, transform_indices = @transform_1, window_bounds = array<i64: 32, 64>}, {pipeline_mode = #tpu.pipeline_mode<synchronous>, transform_indices = @transform_2, window_bounds = array<i64: 1, 64>}, {pipeline_mode = #tpu.pipeline_mode<synchronous>, transform_indices = @transform_3, window_bounds = array<i64: 1, 64>}, {transform_indices = @transform_4, window_bounds = array<i64: 1, 1>}, {transform_indices = @transform_5, window_bounds = array<i64: 1, 256>}]} {
    %c0 = arith.constant 0 : index
    %c0_0 = arith.constant 0 : index
    %0 = vector.load %arg1[%c0, %c0_0] : memref<256x32xf32, #tpu.memory_space<vmem>>, vector<256x32xf32>
    %c0_1 = arith.constant 0 : index
    %c0_2 = arith.constant 0 : index
    %1 = vector.load %arg2[%c0_1, %c0_2] : memref<32x64xf32, #tpu.memory_space<vmem>>, vector<32x64xf32>
    %cst = arith.constant dense<0.000000e+00> : vector<256x64xf32>
    %2 = tpu.matmul %0, %1, %cst {dimension_numbers = #tpu.dot_dimension_numbers<[1], [0], [0], [1], [0, 0, 1, 1], [], []>} : vector<256x32xf32>, vector<32x64xf32>, vector<256x64xf32> -> vector<256x64xf32>
    %c0_3 = arith.constant 0 : index
    %c0_4 = arith.constant 0 : index
    %3 = vector.load %arg3[%c0_3, %c0_4] : memref<1x64xf32, #tpu.memory_space<vmem>>, vector<1x64xf32>
    %4 = vector.broadcast %3 : vector<1x64xf32> to vector<256x64xf32>
    %5 = arith.addf %2, %4 : vector<256x64xf32>
    %cst_5 = arith.constant 0.000000e+00 : f32
    %6 = vector.broadcast %cst_5 : f32 to vector<256x64xf32>
    %7 = arith.maximumf %5, %6 : vector<256x64xf32>
    %c0_6 = arith.constant 0 : index
    %c0_7 = arith.constant 0 : index
    %8 = vector.load %arg4[%c0_6, %c0_7] : memref<1x64xf32, #tpu.memory_space<vmem>>, vector<1x64xf32>
    %cst_8 = arith.constant dense<0.000000e+00> : vector<1x256xf32>
    %9 = tpu.matmul %8, %7, %cst_8 {dimension_numbers = #tpu.dot_dimension_numbers<[1], [1], [0], [0], [0, 0, 1, 0], [], []>} : vector<1x64xf32>, vector<256x64xf32>, vector<1x256xf32> -> vector<1x256xf32>
    %c0_9 = arith.constant 0 : index
    %c0_10 = arith.constant 0 : index
    %10 = memref.load %arg5[%c0_9, %c0_10] : memref<1x1xf32, #tpu.memory_space<smem>>
    %11 = vector.broadcast %10 : f32 to vector<1x256xf32>
    %12 = arith.addf %9, %11 : vector<1x256xf32>
    %c0_11 = arith.constant 0 : index
    %c0_12 = arith.constant 0 : index
    %13 = vector.load %arg6[%c0_11, %c0_12] : memref<1x256xf32, #tpu.memory_space<vmem>>, vector<1x256xf32>
    tpu.vector_store %arg6[%c0_11, %c0_12], %12 {strides = array<i32>} : memref<1x256xf32, #tpu.memory_space<vmem>>, vector<1x256xf32>,
    return
  }
  func.func @transform_0(%arg0: i32) -> (i32, i32) {
    %c0_i32 = arith.constant 0 : i32
    %c0_i32_0 = arith.constant 0 : i32
    return %arg0, %c0_i32 : i32, i32
  }
  func.func @transform_1(%arg0: i32) -> (i32, i32) {
    %c0_i32 = arith.constant 0 : i32
    %c0_i32_0 = arith.constant 0 : i32
    %c0_i32_1 = arith.constant 0 : i32
    return %c0_i32, %c0_i32_0 : i32, i32
  }
  func.func @transform_2(%arg0: i32) -> (i32, i32) {
    %c0_i32 = arith.constant 0 : i32
    %c0_i32_0 = arith.constant 0 : i32
    %c0_i32_1 = arith.constant 0 : i32
    return %c0_i32, %c0_i32_0 : i32, i32
  }
  func.func @transform_3(%arg0: i32) -> (i32, i32) {
    %c0_i32 = arith.constant 0 : i32
    %c0_i32_0 = arith.constant 0 : i32
    %c0_i32_1 = arith.constant 0 : i32
    return %c0_i32, %c0_i32_0 : i32, i32
  }
  func.func @transform_4(%arg0: i32) -> (i32, i32) {
    %c0_i32 = arith.constant 0 : i32
    %c0_i32_0 = arith.constant 0 : i32
    %c0_i32_1 = arith.constant 0 : i32
    return %c0_i32, %c0_i32_0 : i32, i32
  }
  func.func @transform_5(%arg0: i32) -> (i32, i32) {
    %c0_i32 = arith.constant 0 : i32
    %c0_i32_0 = arith.constant 0 : i32
    return %arg0, %c0_i32 : i32, i32
  }
}

</mosaic_0001>

<llo_original>
// kernel: _decoder_pallas.1
$region0: #{_decoder_pallas.1}
  #allocation0 [shape = 'u32[]', space=smem, size = 0x4, offset = 0x4, fixed_abs, tag = 'smem constant byte address 0x4 - core index']
  #allocation1 [shape = 'u32[144,128]{1,0:T(1,128)}', space=vmem, size = 0x12000, scoped, tag = 'internal scratch']
  #allocation2 [shape = 'f32[1,1]{1,0:T(1,128)S(6)}', space=smem, size = 0x200, scoped, tag = 'scoped memory for _decoder_pallas.1']
  %s0 = inlined_call_operand.vmem [shape: f32[256,32], index: 0, kind: input, shape index: {}]
  %s1 = inlined_call_operand.vmem [shape: f32[32,64], index: 1, kind: input, shape index: {}]
  %s2 = inlined_call_operand.vmem [shape: f32[1,64], index: 2, kind: input, shape index: {}]
  %s3 = inlined_call_operand.vmem [shape: f32[1,64], index: 3, kind: input, shape index: {}]
  %s4 = inlined_call_operand.<no memory space> [shape: f32[1,1], index: 4, kind: input, shape index: {}]
  %s5 = inlined_call_operand.hbm [shape: f32[1,256], index: 5, kind: output, shape index: {}]
  %s6 = sld [smem:[#allocation0]]
  $region30: #{_decoder_pallas.1} parent=0
    _
  %s8 = ssub.s32 1, %s6
  %s9 = scalar_select 0, %s8, %s6
  %10 = sst [smem:[#allocation2]] %s4
  $region1: #{_decoder_pallas.1} parent=0
    #allocation3 [shape = 'u8[1024]{0}', space=vmem, size = 0x400, scoped, tag = 'output window, operand 0, single buffered']
    #allocation4 [shape = 's32[1]{0}', space=sflag, size = 0x4, scoped, tag = 'scoped memory for _decoder_pallas.1']
    %11 = vsyncpa [#allocation4], 0
    // Predicated region
    $region2: #{_decoder_pallas.1} parent=1 // pred_check
      _
    $region3: #{_decoder_pallas.1} parent=1 // pred_check_branch
      %13 = sbr.rel (0) target = $region5
    $region4: #{_decoder_pallas.1} parent=1 // pred_region
      _
    $region5: #{_decoder_pallas.1} parent=1 // pred_fallthru
      _
    // Predicated region
    $region6: #{_decoder_pallas.1} parent=1 // pred_check
      _
    $region7: #{_decoder_pallas.1} parent=1 // pred_check_branch
      %15 = sbr.rel (0) target = $region9
    $region8: #{_decoder_pallas.1} parent=1 // pred_region
      _
    $region9: #{_decoder_pallas.1} parent=1 // pred_fallthru
      _
    // Predicated region
    $region10: #{_decoder_pallas.1} parent=1 // pred_check
      _
    $region11: #{_decoder_pallas.1} parent=1 // pred_check_branch
      %17 = sbr.rel (0) target = $region13
    $region12: #{_decoder_pallas.1} parent=1 // pred_region
      _
    $region13: #{_decoder_pallas.1} parent=1 // pred_fallthru
      _
    // Predicated region
    $region14: #{_decoder_pallas.1} parent=1 // pred_check
      _
    $region15: #{_decoder_pallas.1} parent=1 // pred_check_branch
      %19 = sbr.rel (0) target = $region17
    $region16: #{_decoder_pallas.1} parent=1 // pred_region
      _
    $region17: #{_decoder_pallas.1} parent=1 // pred_fallthru
      _
    // Predicated region
    $region18: #{_decoder_pallas.1} parent=1 // pred_check
      _
    $region19: #{_decoder_pallas.1} parent=1 // pred_check_branch
      %21 = sbr.rel (0) target = $region21
    $region20: #{_decoder_pallas.1} parent=1 // pred_region
      _
    $region21: #{_decoder_pallas.1} parent=1 // pred_fallthru
      _
    %v22 = vld [vmem:[%s0] sm:$0xff]
    %v23 = vld [vmem:[%s0 + $0x8] sm:$0xff]
    %v24 = vld [vmem:[%s0 + $0x10] sm:$0xff]
    %v25 = vld [vmem:[%s0 + $0x18] sm:$0xff]
    %v26 = vld [vmem:[%s0 + $0x20] sm:$0xff]
    %v27 = vld [vmem:[%s0 + $0x28] sm:$0xff]
    %v28 = vld [vmem:[%s0 + $0x30] sm:$0xff]
    %v29 = vld [vmem:[%s0 + $0x38] sm:$0xff]
    %v30 = vld [vmem:[%s0 + $0x40] sm:$0xff]
    %v31 = vld [vmem:[%s0 + $0x48] sm:$0xff]
    %v32 = vld [vmem:[%s0 + $0x50] sm:$0xff]
    %v33 = vld [vmem:[%s0 + $0x58] sm:$0xff]
    %v34 = vld [vmem:[%s0 + $0x60] sm:$0xff]
    %v35 = vld [vmem:[%s0 + $0x68] sm:$0xff]
    %v36 = vld [vmem:[%s0 + $0x70] sm:$0xff]
    %v37 = vld [vmem:[%s0 + $0x78] sm:$0xff]
    %v38 = vld [vmem:[%s0 + $0x80] sm:$0xff]
    %v39 = vld [vmem:[%s0 + $0x88] sm:$0xff]
    %v40 = vld [vmem:[%s0 + $0x90] sm:$0xff]
    %v41 = vld [vmem:[%s0 + $0x98] sm:$0xff]
    %v42 = vld [vmem:[%s0 + $0xa0] sm:$0xff]
    %v43 = vld [vmem:[%s0 + $0xa8] sm:$0xff]
    %v44 = vld [vmem:[%s0 + $0xb0] sm:$0xff]
    %v45 = vld [vmem:[%s0 + $0xb8] sm:$0xff]
    %v46 = vld [vmem:[%s0 + $0xc0] sm:$0xff]
    %v47 = vld [vmem:[%s0 + $0xc8] sm:$0xff]
    %v48 = vld [vmem:[%s0 + $0xd0] sm:$0xff]
    %v49 = vld [vmem:[%s0 + $0xd8] sm:$0xff]
    %v50 = vld [vmem:[%s0 + $0xe0] sm:$0xff]
    %v51 = vld [vmem:[%s0 + $0xe8] sm:$0xff]
    %v52 = vld [vmem:[%s0 + $0xf0] sm:$0xff]
    %v53 = vld [vmem:[%s0 + $0xf8] sm:$0xff]
    %v54 = vld [vmem:[%s1] sm:$0xff]
    %v55 = vld [vmem:[%s1 + $0x8] sm:$0xff]
    %v56 = vld [vmem:[%s1 + $0x10] sm:$0xff]
    %v57 = vld [vmem:[%s1 + $0x18] sm:$0xff]
    %v58 = vld [vmem:[%s2] sm:$0x1]
    %v60 = vlaneseq
    %v61 = vshrl.u32 %v60, 7
    %v62 = vsub.s32 0, %v61
    %v63 = vrot.slane %v58, %v62
    %vm65 = vcmask 261120
    %v67 = vsel %vm65, %v22, 0
    %v70 = vsel %vm65, %v23, 0
    %v73 = vsel %vm65, %v24, 0
    %v76 = vsel %vm65, %v25, 0
    %v79 = vsel %vm65, %v26, 0
    %v82 = vsel %vm65, %v27, 0
    %v85 = vsel %vm65, %v28, 0
    %v88 = vsel %vm65, %v29, 0
    %v91 = vsel %vm65, %v30, 0
    %v94 = vsel %vm65, %v31, 0
    %v97 = vsel %vm65, %v32, 0
    %v100 = vsel %vm65, %v33, 0
    %v103 = vsel %vm65, %v34, 0
    %v106 = vsel %vm65, %v35, 0
    %v109 = vsel %vm65, %v36, 0
    %v112 = vsel %vm65, %v37, 0
    %v115 = vsel %vm65, %v38, 0
    %v118 = vsel %vm65, %v39, 0
    %v121 = vsel %vm65, %v40, 0
    %v124 = vsel %vm65, %v41, 0
    %v127 = vsel %vm65, %v42, 0
    %v130 = vsel %vm65, %v43, 0
    %v133 = vsel %vm65, %v44, 0
    %v136 = vsel %vm65, %v45, 0
    %v139 = vsel %vm65, %v46, 0
    %v142 = vsel %vm65, %v47, 0
    %v145 = vsel %vm65, %v48, 0
    %v148 = vsel %vm65, %v49, 0
    %v151 = vsel %vm65, %v50, 0
    %v154 = vsel %vm65, %v51, 0
    %v157 = vsel %vm65, %v52, 0
    %v160 = vsel %vm65, %v53, 0
    %162 = vmatprep.subr.mxu0 0.0
    %163 = vmatpush1.msra.mxu0 0.0
    %164 = vmatprep.subr.mxu0 0.0
    %165 = vmatpush1.msra.mxu0 0.0
    %166 = vmatprep.subr.mxu0 0.0
    %167 = vmatpush1.msra.mxu0 0.0
    %168 = vmatprep.subr.mxu0 0.0
    %169 = vmatpush1.msra.mxu0 0.0
    %170 = vmatprep.subr.mxu0 0.0
    %171 = vmatpush1.msra.mxu0 0.0
    %172 = vmatprep.subr.mxu0 0.0
    %173 = vmatpush1.msra.mxu0 0.0
    %174 = vmatprep.subr.mxu0 0.0
    %175 = vmatpush1.msra.mxu0 0.0
    %176 = vmatprep.subr.mxu0 0.0
    %177 = vmatpush1.msra.mxu0 0.0
    %178 = vmatprep.subr.mxu0 0.0
    %179 = vmatpush1.msra.mxu0 0.0
    %180 = vmatprep.subr.mxu0 0.0
    %181 = vmatpush1.msra.mxu0 0.0
    %182 = vmatprep.subr.mxu0 0.0
    %183 = vmatpush1.msra.mxu0 0.0
    %184 = vmatprep.subr.mxu0 0.0
    %185 = vmatpush1.msra.mxu0 0.0
    %186 = vmatprep.subr.mxu0 0.0
    %187 = vmatpush1.msra.mxu0 %v57
    %188 = vmatprep.subr.mxu0 0.0
    %189 = vmatpush1.msra.mxu0 %v56
    %190 = vmatprep.subr.mxu0 0.0
    %191 = vmatpush1.msra.mxu0 %v55
    %192 = vmatprep.subr.mxu0 0.0
    %193 = vmatpush1.msra.mxu0 %v54
    %194 = vmatprep.subr.mxu0 0.0
    %195 = vmatpush2.msra.mxu0 0.0
    %196 = vmatprep.subr.mxu0 0.0
    %197 = vmatpush2.msra.mxu0 0.0
    %198 = vmatprep.subr.mxu0 0.0
    %199 = vmatpush2.msra.mxu0 0.0
    %200 = vmatprep.subr.mxu0 0.0
    %201 = vmatpush2.msra.mxu0 0.0
    %202 = vmatprep.subr.mxu0 0.0
    %203 = vmatpush2.msra.mxu0 0.0
    %204 = vmatprep.subr.mxu0 0.0
    %205 = vmatpush2.msra.mxu0 0.0
    %206 = vmatprep.subr.mxu0 0.0
    %207 = vmatpush2.msra.mxu0 0.0
    %208 = vmatprep.subr.mxu0 0.0
    %209 = vmatpush2.msra.mxu0 0.0
    %210 = vmatprep.subr.mxu0 0.0
    %211 = vmatpush2.msra.mxu0 0.0
    %212 = vmatprep.subr.mxu0 0.0
    %213 = vmatpush2.msra.mxu0 0.0
    %214 = vmatprep.subr.mxu0 0.0
    %215 = vmatpush2.msra.mxu0 0.0
    %216 = vmatprep.subr.mxu0 0.0
    %217 = vmatpush2.msra.mxu0 0.0
    %218 = vmatprep.subr.mxu0 0.0
    %219 = vmatpush2.msra.mxu0 0.0
    %220 = vmatprep.subr.mxu0 0.0
    %221 = vmatpush2.msra.mxu0 0.0
    %222 = vmatprep.subr.mxu0 0.0
    %223 = vmatpush2.msra.mxu0 0.0
    %224 = vmatprep.subr.mxu0 0.0
    %225 = vmatpush2.msra.mxu0 0.0
    %226 = vmatprep.mubr.f32.mxu0 0.0
    %227 = vmatmul.mubr.f32.gmra.mxu0 %v67
    %v228 = vpop.f32.mrf.mxu0
    %v229 = vadd.f32 %v63, %v228
    %v230 = vpop.f32.mrf.mxu0
    %231 = vmatprep.mubr.f32.mxu0 0.0
    %232 = vmatmul.mubr.f32.gmra.mxu0 %v70
    %v233 = vpop.f32.mrf.mxu0
    %v234 = vadd.f32 %v63, %v233
    %v235 = vpop.f32.mrf.mxu0
    %236 = vmatprep.mubr.f32.mxu0 0.0
    %237 = vmatmul.mubr.f32.gmra.mxu0 %v73
    %v238 = vpop.f32.mrf.mxu0
    %v239 = vadd.f32 %v63, %v238
    %v240 = vpop.f32.mrf.mxu0
    %241 = vmatprep.mubr.f32.mxu0 0.0
    %242 = vmatmul.mubr.f32.gmra.mxu0 %v76
    %v243 = vpop.f32.mrf.mxu0
    %v244 = vadd.f32 %v63, %v243
    %v245 = vpop.f32.mrf.mxu0
    %246 = vmatprep.mubr.f32.mxu0 0.0
    %247 = vmatmul.mubr.f32.gmra.mxu0 %v79
    %v248 = vpop.f32.mrf.mxu0
    %v249 = vadd.f32 %v63, %v248
    %v250 = vpop.f32.mrf.mxu0
    %251 = vmatprep.mubr.f32.mxu0 0.0
    %252 = vmatmul.mubr.f32.gmra.mxu0 %v82
    %v253 = vpop.f32.mrf.mxu0
    %v254 = vadd.f32 %v63, %v253
    %v255 = vpop.f32.mrf.mxu0
    %256 = vmatprep.mubr.f32.mxu0 0.0
    %257 = vmatmul.mubr.f32.gmra.mxu0 %v85
    %v258 = vpop.f32.mrf.mxu0
    %v259 = vadd.f32 %v63, %v258
    %v260 = vpop.f32.mrf.mxu0
    %261 = vmatprep.mubr.f32.mxu0 0.0
    %262 = vmatmul.mubr.f32.gmra.mxu0 %v88
    %v263 = vpop.f32.mrf.mxu0
    %v264 = vadd.f32 %v63, %v263
    %v265 = vpop.f32.mrf.mxu0
    %266 = vmatprep.mubr.f32.mxu0 0.0
    %267 = vmatmul.mubr.f32.gmra.mxu0 %v91
    %v268 = vpop.f32.mrf.mxu0
    %v269 = vadd.f32 %v63, %v268
    %v270 = vpop.f32.mrf.mxu0
    %271 = vmatprep.mubr.f32.mxu0 0.0
    %272 = vmatmul.mubr.f32.gmra.mxu0 %v94
    %v273 = vpop.f32.mrf.mxu0
    %v274 = vadd.f32 %v63, %v273
    %v275 = vpop.f32.mrf.mxu0
    %276 = vmatprep.mubr.f32.mxu0 0.0
    %277 = vmatmul.mubr.f32.gmra.mxu0 %v97
    %v278 = vpop.f32.mrf.mxu0
    %v279 = vadd.f32 %v63, %v278
    %v280 = vpop.f32.mrf.mxu0
    %281 = vmatprep.mubr.f32.mxu0 0.0
    %282 = vmatmul.mubr.f32.gmra.mxu0 %v100
    %v283 = vpop.f32.mrf.mxu0
    %v284 = vadd.f32 %v63, %v283
    %v285 = vpop.f32.mrf.mxu0
    %286 = vmatprep.mubr.f32.mxu0 0.0
    %287 = vmatmul.mubr.f32.gmra.mxu0 %v103
    %v288 = vpop.f32.mrf.mxu0
    %v289 = vadd.f32 %v63, %v288
    %v290 = vpop.f32.mrf.mxu0
    %291 = vmatprep.mubr.f32.mxu0 0.0
    %292 = vmatmul.mubr.f32.gmra.mxu0 %v106
    %v293 = vpop.f32.mrf.mxu0
    %v294 = vadd.f32 %v63, %v293
    %v295 = vpop.f32.mrf.mxu0
    %296 = vmatprep.mubr.f32.mxu0 0.0
    %297 = vmatmul.mubr.f32.gmra.mxu0 %v109
    %v298 = vpop.f32.mrf.mxu0
    %v299 = vadd.f32 %v63, %v298
    %v300 = vpop.f32.mrf.mxu0
    %301 = vmatprep.mubr.f32.mxu0 0.0
    %302 = vmatmul.mubr.f32.gmra.mxu0 %v112
    %v303 = vpop.f32.mrf.mxu0
    %v304 = vadd.f32 %v63, %v303
    %v305 = vpop.f32.mrf.mxu0
    %306 = vmatprep.mubr.f32.mxu0 0.0
    %307 = vmatmul.mubr.f32.gmra.mxu0 %v115
    %v308 = vpop.f32.mrf.mxu0
    %v309 = vadd.f32 %v63, %v308
    %v310 = vpop.f32.mrf.mxu0
    %311 = vmatprep.mubr.f32.mxu0 0.0
    %312 = vmatmul.mubr.f32.gmra.mxu0 %v118
    %v313 = vpop.f32.mrf.mxu0
    %v314 = vadd.f32 %v63, %v313
    %v315 = vpop.f32.mrf.mxu0
    %316 = vmatprep.mubr.f32.mxu0 0.0
    %317 = vmatmul.mubr.f32.gmra.mxu0 %v121
    %v318 = vpop.f32.mrf.mxu0
    %v319 = vadd.f32 %v63, %v318
    %v320 = vpop.f32.mrf.mxu0
    %321 = vmatprep.mubr.f32.mxu0 0.0
    %322 = vmatmul.mubr.f32.gmra.mxu0 %v124
    %v323 = vpop.f32.mrf.mxu0
    %v324 = vadd.f32 %v63, %v323
    %v325 = vpop.f32.mrf.mxu0
    %326 = vmatprep.mubr.f32.mxu0 0.0
    %327 = vmatmul.mubr.f32.gmra.mxu0 %v127
    %v328 = vpop.f32.mrf.mxu0
    %v329 = vadd.f32 %v63, %v328
    %v330 = vpop.f32.mrf.mxu0
    %331 = vmatprep.mubr.f32.mxu0 0.0
    %332 = vmatmul.mubr.f32.gmra.mxu0 %v130
    %v333 = vpop.f32.mrf.mxu0
    %v334 = vadd.f32 %v63, %v333
    %v335 = vpop.f32.mrf.mxu0
    %336 = vmatprep.mubr.f32.mxu0 0.0
    %337 = vmatmul.mubr.f32.gmra.mxu0 %v133
    %v338 = vpop.f32.mrf.mxu0
    %v339 = vadd.f32 %v63, %v338
    %v340 = vpop.f32.mrf.mxu0
    %341 = vmatprep.mubr.f32.mxu0 0.0
    %342 = vmatmul.mubr.f32.gmra.mxu0 %v136
    %v343 = vpop.f32.mrf.mxu0
    %v344 = vadd.f32 %v63, %v343
    %v345 = vpop.f32.mrf.mxu0
    %346 = vmatprep.mubr.f32.mxu0 0.0
    %347 = vmatmul.mubr.f32.gmra.mxu0 %v139
    %v348 = vpop.f32.mrf.mxu0
    %v349 = vadd.f32 %v63, %v348
    %v350 = vpop.f32.mrf.mxu0
    %351 = vmatprep.mubr.f32.mxu0 0.0
    %352 = vmatmul.mubr.f32.gmra.mxu0 %v142
    %v353 = vpop.f32.mrf.mxu0
    %v354 = vadd.f32 %v63, %v353
    %v355 = vpop.f32.mrf.mxu0
    %356 = vmatprep.mubr.f32.mxu0 0.0
    %357 = vmatmul.mubr.f32.gmra.mxu0 %v145
    %v358 = vpop.f32.mrf.mxu0
    %v359 = vadd.f32 %v63, %v358
    %v360 = vpop.f32.mrf.mxu0
    %361 = vmatprep.mubr.f32.mxu0 0.0
    %362 = vmatmul.mubr.f32.gmra.mxu0 %v148
    %v363 = vpop.f32.mrf.mxu0
    %v364 = vadd.f32 %v63, %v363
    %v365 = vpop.f32.mrf.mxu0
    %366 = vmatprep.mubr.f32.mxu0 0.0
    %367 = vmatmul.mubr.f32.gmra.mxu0 %v151
    %v368 = vpop.f32.mrf.mxu0
    %v369 = vadd.f32 %v63, %v368
    %v370 = vpop.f32.mrf.mxu0
    %371 = vmatprep.mubr.f32.mxu0 0.0
    %372 = vmatmul.mubr.f32.gmra.mxu0 %v154
    %v373 = vpop.f32.mrf.mxu0
    %v374 = vadd.f32 %v63, %v373
    %v375 = vpop.f32.mrf.mxu0
    %376 = vmatprep.mubr.f32.mxu0 0.0
    %377 = vmatmul.mubr.f32.gmra.mxu0 %v157
    %v378 = vpop.f32.mrf.mxu0
    %v379 = vadd.f32 %v63, %v378
    %v380 = vpop.f32.mrf.mxu0
    %381 = vmatprep.mubr.f32.mxu0 0.0
    %382 = vmatmul.mubr.f32.gmra.mxu0 %v160
    %v383 = vpop.f32.mrf.mxu0
    %v384 = vadd.f32 %v63, %v383
    %v385 = vpop.f32.mrf.mxu0
    %386 = vdwg.mxu0
    %v387 = vmax.f32 %v229, 0.0
    %v388 = vmax.f32 %v234, 0.0
    %v389 = vmax.f32 %v239, 0.0
    %v390 = vmax.f32 %v244, 0.0
    %v391 = vmax.f32 %v249, 0.0
    %v392 = vmax.f32 %v254, 0.0
    %v393 = vmax.f32 %v259, 0.0
    %v394 = vmax.f32 %v264, 0.0
    %v395 = vmax.f32 %v269, 0.0
    %v396 = vmax.f32 %v274, 0.0
    %v397 = vmax.f32 %v279, 0.0
    %v398 = vmax.f32 %v284, 0.0
    %v399 = vmax.f32 %v289, 0.0
    %v400 = vmax.f32 %v294, 0.0
    %v401 = vmax.f32 %v299, 0.0
    %v402 = vmax.f32 %v304, 0.0
    %v403 = vmax.f32 %v309, 0.0
    %v404 = vmax.f32 %v314, 0.0
    %v405 = vmax.f32 %v319, 0.0
    %v406 = vmax.f32 %v324, 0.0
    %v407 = vmax.f32 %v329, 0.0
    %v408 = vmax.f32 %v334, 0.0
    %v409 = vmax.f32 %v339, 0.0
    %v410 = vmax.f32 %v344, 0.0
    %v411 = vmax.f32 %v349, 0.0
    %v412 = vmax.f32 %v354, 0.0
    %v413 = vmax.f32 %v359, 0.0
    %v414 = vmax.f32 %v364, 0.0
    %v415 = vmax.f32 %v369, 0.0
    %v416 = vmax.f32 %v374, 0.0
    %v417 = vmax.f32 %v379, 0.0
    %v418 = vmax.f32 %v384, 0.0
    %v419 = vld [vmem:[%s3] sm:$0x1]
    %s420 = sld [smem:[#allocation2]]
    %v421 = vstv %s420
    %vm422 = vcmask 523264
    %v424 = vsel %vm422, %v419, 0
    %v427 = vsel %vm422, %v387, 0
    %v430 = vsel %vm422, %v388, 0
    %v433 = vsel %vm422, %v389, 0
    %v436 = vsel %vm422, %v390, 0
    %v439 = vsel %vm422, %v391, 0
    %v442 = vsel %vm422, %v392, 0
    %v445 = vsel %vm422, %v393, 0
    %v448 = vsel %vm422, %v394, 0
    %v451 = vsel %vm422, %v395, 0
    %v454 = vsel %vm422, %v396, 0
    %v457 = vsel %vm422, %v397, 0
    %v460 = vsel %vm422, %v398, 0
    %v463 = vsel %vm422, %v399, 0
    %v466 = vsel %vm422, %v400, 0
    %v469 = vsel %vm422, %v401, 0
    %v472 = vsel %vm422, %v402, 0
    %v475 = vsel %vm422, %v403, 0
    %v478 = vsel %vm422, %v404, 0
    %v481 = vsel %vm422, %v405, 0
    %v484 = vsel %vm422, %v406, 0
    %v487 = vsel %vm422, %v407, 0
    %v490 = vsel %vm422, %v408, 0
    %v493 = vsel %vm422, %v409, 0
    %v496 = vsel %vm422, %v410, 0
    %v499 = vsel %vm422, %v411, 0
    %v502 = vsel %vm422, %v412, 0
    %v505 = vsel %vm422, %v413, 0
    %v508 = vsel %vm422, %v414, 0
    %v511 = vsel %vm422, %v415, 0
    %v514 = vsel %vm422, %v416, 0
    %v517 = vsel %vm422, %v417, 0
    %v520 = vsel %vm422, %v418, 0
    %522 = vmatprep.subr.mxu0 0.0
    %523 = vmatpush1.xpose.msra.mxu0 %v472
    %524 = vmatprep.subr.mxu0 0.0
    %525 = vmatpush1.xpose.msra.mxu0 %v469
    %526 = vmatprep.subr.mxu0 0.0
    %527 = vmatpush1.xpose.msra.mxu0 %v466
    %528 = vmatprep.subr.mxu0 0.0
    %529 = vmatpush1.xpose.msra.mxu0 %v463
    %530 = vmatprep.subr.mxu0 0.0
    %531 = vmatpush1.xpose.msra.mxu0 %v460
    %532 = vmatprep.subr.mxu0 0.0
    %533 = vmatpush1.xpose.msra.mxu0 %v457
    %534 = vmatprep.subr.mxu0 0.0
    %535 = vmatpush1.xpose.msra.mxu0 %v454
    %536 = vmatprep.subr.mxu0 0.0
    %537 = vmatpush1.xpose.msra.mxu0 %v451
    %538 = vmatprep.subr.mxu0 0.0
    %539 = vmatpush1.xpose.msra.mxu0 %v448
    %540 = vmatprep.subr.mxu0 0.0
    %541 = vmatpush1.xpose.msra.mxu0 %v445
    %542 = vmatprep.subr.mxu0 0.0
    %543 = vmatpush1.xpose.msra.mxu0 %v442
    %544 = vmatprep.subr.mxu0 0.0
    %545 = vmatpush1.xpose.msra.mxu0 %v439
    %546 = vmatprep.subr.mxu0 0.0
    %547 = vmatpush1.xpose.msra.mxu0 %v436
    %548 = vmatprep.subr.mxu0 0.0
    %549 = vmatpush1.xpose.msra.mxu0 %v433
    %550 = vmatprep.subr.mxu0 0.0
    %551 = vmatpush1.xpose.msra.mxu0 %v430
    %552 = vmatprep.subr.mxu0 0.0
    %553 = vmatpush1.xpose.msra.mxu0 %v427
    %554 = vmatprep.subr.mxu0 0.0
    %555 = vmatpush2.xpose.msra.mxu0 %v520
    %556 = vmatprep.subr.mxu0 0.0
    %557 = vmatpush2.xpose.msra.mxu0 %v517
    %558 = vmatprep.subr.mxu0 0.0
    %559 = vmatpush2.xpose.msra.mxu0 %v514
    %560 = vmatprep.subr.mxu0 0.0
    %561 = vmatpush2.xpose.msra.mxu0 %v511
    %562 = vmatprep.subr.mxu0 0.0
    %563 = vmatpush2.xpose.msra.mxu0 %v508
    %564 = vmatprep.subr.mxu0 0.0
    %565 = vmatpush2.xpose.msra.mxu0 %v505
    %566 = vmatprep.subr.mxu0 0.0
    %567 = vmatpush2.xpose.msra.mxu0 %v502
    %568 = vmatprep.subr.mxu0 0.0
    %569 = vmatpush2.xpose.msra.mxu0 %v499
    %570 = vmatprep.subr.mxu0 0.0
    %571 = vmatpush2.xpose.msra.mxu0 %v496
    %572 = vmatprep.subr.mxu0 0.0
    %573 = vmatpush2.xpose.msra.mxu0 %v493
    %574 = vmatprep.subr.mxu0 0.0
    %575 = vmatpush2.xpose.msra.mxu0 %v490
    %576 = vmatprep.subr.mxu0 0.0
    %577 = vmatpush2.xpose.msra.mxu0 %v487
    %578 = vmatprep.subr.mxu0 0.0
    %579 = vmatpush2.xpose.msra.mxu0 %v484
    %580 = vmatprep.subr.mxu0 0.0
    %581 = vmatpush2.xpose.msra.mxu0 %v481
    %582 = vmatprep.subr.mxu0 0.0
    %583 = vmatpush2.xpose.msra.mxu0 %v478
    %584 = vmatprep.subr.mxu0 0.0
    %585 = vmatpush2.xpose.msra.mxu0 %v475
    %586 = vmatprep.mubr.f32.mxu0 0.0
    %587 = vmatmul.mubr.f32.gmra.mxu0 %v424
    %v588 = vpop.f32.mrf.mxu0
    %v589 = vadd.f32 %v421, %v588
    %v590 = vpop.f32.mrf.mxu0
    %v591 = vadd.f32 %v421, %v590
    %592 = vdwg.mxu0
    %v595 = vcombine.low %v589, %v591
    %v597 = vunpack.c.l.s4 1966171168
    %v598 = vunpack.c.0.s8 %v597
    %v599 = vlaneseq
    %v600 = vshrl.u32 %v599, 7
    %v601 = vsub.s32 %v598, %v600
    %v602 = vrot.slane %v595, %v601
    %v604 = vunpack.c.l.s4 1966171168
    %v605 = vunpack.c.0.s8 %v604
    %v606 = vlaneseq
    %v607 = vshrl.u32 %v606, 7
    %v608 = vsub.s32 %v605, %v607
    %v609 = vrot.slane %v602, %v608
    %v611 = vlaneseq
    %vm612 = vcmp.ge.s32.totalorder %v611, 0
    %vm613 = vcmp.lt.s32.totalorder %v611, 256
    %vm614 = vmand %vm612, %vm613
    %615 = vst.msk [vmem:[#allocation3] sm:$0x3] %vm614, %v609
    // Predicated region
    $region22: #{_decoder_pallas.1} parent=1 // pred_check
      _
    $region23: #{_decoder_pallas.1} parent=1 // pred_check_branch
      %617 = sbr.rel (0) target = $region25
    $region24: #{_decoder_pallas.1} parent=1 // pred_region
      %s619 = ssub.s32 32, 32
      %620 = vsyncadd [#allocation4], %s619
      %s622 = sshll.u32 [#allocation3], 4
      %s623 = int_to_ptr.vmem [resolvable:$true] %s622
      %625 = dma.vmem_to_hbm [thread:$0]  %s623, 32, %s5, [#allocation4]
    $region25: #{_decoder_pallas.1} parent=1 // pred_fallthru
      _
    // Predicated region
    $region26: #{_decoder_pallas.1} parent=1 // pred_check
      _
    $region27: #{_decoder_pallas.1} parent=1 // pred_check_branch
      %627 = sbr.rel (0) target = $region29
    $region28: #{_decoder_pallas.1} parent=1 // pred_region
      %628 = dma.done [#allocation4], 32
    $region29: #{_decoder_pallas.1} parent=1 // pred_fallthru
      _
    %629 = vsyncpa [#allocation4], 1

</llo_original>
